<compile_context>
chip_gen: v7x
topology: tpu7x:2x2x1
jax: 0.10.0
libtpu: 0.0.40
codegen_flags: <defaults>
</compile_context>

<pallas_src>
import jax
import jax.numpy as jnp
import numpy as np
from jax.experimental import pallas as pl
from jax.experimental.pallas import tpu as pltpu


# ---------------------------------------------------------------------------
# Reference stft_lfhf (STFT -> split bins -> iSTFT), used both to build the
# folded linear operator and as the correctness reference.
# TODO(synk): stft_lfhf is not defined in the provided source; we assume a
# periodic-Hann, center=True (reflect pad) STFT and split the onesided bins in
# half (low = first half). Any other linear STFT variant only changes M.
# ---------------------------------------------------------------------------
def stft_lfhf_reference(x, nfft, hop):
    """x: (N, L) float32 -> (x_low, x_high), each (N, L)."""
    N, L = x.shape
    pad = nfft // 2
    xp = jnp.pad(x, ((0, 0), (pad, pad)), mode="reflect")
    Lp = L + 2 * pad
    n_frames = 1 + (Lp - nfft) // hop
    n = jnp.arange(nfft)
    win = 0.5 - 0.5 * jnp.cos(2.0 * jnp.pi * n / nfft)          # periodic Hann
    idx = jnp.arange(n_frames)[:, None] * hop + n[None, :]      # (n_frames, nfft)
    frames = xp[:, idx] * win[None, None, :]                    # (N, n_frames, nfft)
    X = jnp.fft.rfft(frames, n=nfft, axis=-1)                   # (N, n_frames, nfft//2+1)
    nbins = nfft // 2 + 1
    cutoff = nbins // 2
    low_mask = (jnp.arange(nbins) < cutoff).astype(X.dtype)

    def istft(Xc):
        fr = jnp.fft.irfft(Xc, n=nfft, axis=-1) * win[None, None, :]
        out = jnp.zeros((N, Lp), dtype=x.dtype).at[:, idx].add(fr.astype(x.dtype))
        wsum = jnp.zeros((Lp,), dtype=x.dtype).at[idx].add(
            jnp.broadcast_to(win[None, :] ** 2, (n_frames, nfft)).astype(x.dtype))
        out = out / jnp.maximum(wsum, 1e-8)[None, :]
        return out[:, pad:pad + L]

    return istft(X * low_mask), istft(X * (1.0 - low_mask))


def make_lfhf_operators(seq_len, nfft, hop):
    """(L, L) matrices M_l, M_h such that lowpass(x) = x @ M_l for x of shape (..., L)."""
    eye = jnp.eye(seq_len, dtype=jnp.float32)
    m_l, m_h = stft_lfhf_reference(eye, nfft, hop)   # row j = response to e_j
    return m_l, m_h


# ---------------------------------------------------------------------------
# Parameter folding (done once, outside the hot path).
# ---------------------------------------------------------------------------
def prepare_params(weight, bias, seq_len, nfft, hop, compute_dtype=jnp.float32):
    """
    weight: (C, pred_len, seq_len)  per-channel nn.Linear weight (PyTorch layout)
    bias:   (C, pred_len)
    Returns:
      w_bd: (seq_len*C, pred_len*C)  block-diagonal folded weight, channel-minor:
            w_bd[l*C + c, p*C + c'] = (M @ W_c)[l, p] * (c == c'),  M = M_low + M_high
      b_bd: (1, pred_len*C) f32  doubled channel-minor bias (Linear hits both branches)
    """
    C, P, L = weight.shape
    assert L == seq_len
    m_l, m_h = make_lfhf_operators(seq_len, nfft, hop)
    m = (m_l + m_h).astype(jnp.float32)               # x_low + x_high = x @ (M_l + M_h)
    w_clp = jnp.transpose(weight, (0, 2, 1))          # (C, L, P)
    w_fold = jnp.einsum("lm,cmp->clp", m, w_clp)      # (C, L, P):  M @ W_c
    eye_c = jnp.eye(C, dtype=jnp.float32)
    # Block-diagonal over channels, channel-minor, matching row-major (L,C)/(P,C) flattening.
    w_bd = jnp.einsum("clp,cd->lcpd", w_fold, eye_c).reshape(L * C, P * C)
    b_bd = (2.0 * bias).T.reshape(1, P * C).astype(jnp.float32)    # [p*C + c] ordering
    return w_bd.astype(compute_dtype), b_bd


# ---------------------------------------------------------------------------
# Pallas kernel: single block, single MXU push + one f32 VPU bias add + one
# lane-dense store. No grid.
#   x_ref: (B, L*C)   w_ref: (L*C, P*C)   b_ref: (1, P*C) f32   o_ref: (B, P*C) f32
# ---------------------------------------------------------------------------
def fdlinear_kernel(x_ref, w_ref, b_ref, o_ref):
    acc = jnp.dot(x_ref[...], w_ref[...], preferred_element_type=jnp.float32)
    o_ref[...] = (acc + b_ref[...]).astype(o_ref.dtype)


@jax.jit
def fdlinear_forward(x, w_bd, b_bd):
    """
    x:    (B, seq_len, C) float32
    w_bd: (seq_len*C, pred_len*C)  block-diagonal folded weight (f32 or bf16)
    b_bd: (1, pred_len*C) float32
    returns (B, pred_len, C) float32
    """
    B, L, C = x.shape
    LC, PC = w_bd.shape
    assert LC == L * C
    P = PC // C
    x2d = x.reshape(B, LC).astype(w_bd.dtype)         # free row-major reshape, no transpose

    out = pl.pallas_call(
        fdlinear_kernel,
        out_shape=jax.ShapeDtypeStruct((B, PC), jnp.float32),
        in_specs=[
            pl.BlockSpec(memory_space=pltpu.MemorySpace.VMEM),   # x2d
            pl.BlockSpec(memory_space=pltpu.MemorySpace.VMEM),   # w_bd
            pl.BlockSpec(memory_space=pltpu.MemorySpace.VMEM),   # b_bd
        ],
        out_specs=pl.BlockSpec(memory_space=pltpu.MemorySpace.VMEM),
    )(x2d, w_bd, b_bd)

    return out.reshape(B, P, C)                        # channel-minor == (B, P, C), no transpose


if __name__ == "__main__":
    # configs: seq_len=16, pred_len=8, enc_in=4, nfft=8, stft_hop_length=4, individual=False
    # (individual=False -> the ModuleList branch: one Linear(seq_len, pred_len) per channel,
    #  the same per-channel Linear applied to both the low and the high branch)
    B, L, P, C = 2, 16, 8, 4
    nfft, hop = 8, 4

    key = jax.random.PRNGKey(0)
    kx, kw, kb = jax.random.split(key, 3)
    x = jax.random.normal(kx, (B, L, C), dtype=jnp.float32)
    bound = 1.0 / np.sqrt(L)
    weight = jax.random.uniform(kw, (C, P, L), minval=-bound, maxval=bound, dtype=jnp.float32)
    bias = jax.random.uniform(kb, (C, P), minval=-bound, maxval=bound, dtype=jnp.float32)

    # Plain-JAX reference of the full (unfolded) forward pass.
    x_bcl = jnp.transpose(x, (0, 2, 1)).reshape(B * C, L)
    xl, xh = stft_lfhf_reference(x_bcl, nfft, hop)
    xl = xl.reshape(B, C, L)
    xh = xh.reshape(B, C, L)
    yl = jnp.einsum("bcl,cpl->bcp", xl, weight) + bias[None]
    yh = jnp.einsum("bcl,cpl->bcp", xh, weight) + bias[None]
    ref = jnp.transpose(yl + yh, (0, 2, 1))            # (B, P, C)

    # f32 compute path: folding is exact up to f32 rounding -> tight tolerance.
    w_bd, b_bd = prepare_params(weight, bias, L, nfft, hop, compute_dtype=jnp.float32)
    y = jax.block_until_ready(fdlinear_forward(x, w_bd, b_bd))
    assert y.shape == (B, P, C)
    assert bool(jnp.all(jnp.isfinite(y)))
    assert bool(jnp.allclose(y, ref, atol=1e-4, rtol=1e-4)), "f32 mismatch vs reference"

    # bf16 compute path (native MXU dtype on v6e/v7x), f32 accumulation + f32 bias add.
    w_bd16, b_bd16 = prepare_params(weight, bias, L, nfft, hop, compute_dtype=jnp.bfloat16)
    y16 = jax.block_until_ready(fdlinear_forward(x, w_bd16, b_bd16))
    assert bool(jnp.allclose(y16, ref, atol=5e-2, rtol=5e-2)), "bf16 mismatch vs reference"

    print("KERNEL_OK")
</pallas_src>

<mosaic_0001>
module attributes {stable_mosaic.version = 11 : i64} {
  func.func @fdlinear_kernel(%arg0: memref<2x64xf32, #tpu.memory_space<vmem>>, %arg1: memref<64x32xf32, #tpu.memory_space<vmem>>, %arg2: memref<1x32xf32, #tpu.memory_space<vmem>>, %arg3: memref<2x32xf32, #tpu.memory_space<vmem>>) attributes {dimension_semantics = [], scalar_prefetch = 0 : i64, scratch_operands = 0 : i64, tpu.core_type = #tpu.core_type<tc>} {
    %c0 = arith.constant 0 : index
    %c0_0 = arith.constant 0 : index
    %0 = vector.load %arg0[%c0, %c0_0] : memref<2x64xf32, #tpu.memory_space<vmem>>, vector<2x64xf32>
    %c0_1 = arith.constant 0 : index
    %c0_2 = arith.constant 0 : index
    %1 = vector.load %arg1[%c0_1, %c0_2] : memref<64x32xf32, #tpu.memory_space<vmem>>, vector<64x32xf32>
    %cst = arith.constant dense<0.000000e+00> : vector<2x32xf32>
    %2 = tpu.matmul %0, %1, %cst {dimension_numbers = #tpu.dot_dimension_numbers<[1], [0], [0], [1], [0, 0, 1, 1], [], []>} : vector<2x64xf32>, vector<64x32xf32>, vector<2x32xf32> -> vector<2x32xf32>
    %c0_3 = arith.constant 0 : index
    %c0_4 = arith.constant 0 : index
    %3 = vector.load %arg2[%c0_3, %c0_4] : memref<1x32xf32, #tpu.memory_space<vmem>>, vector<1x32xf32>
    %4 = vector.broadcast %3 : vector<1x32xf32> to vector<2x32xf32>
    %5 = arith.addf %2, %4 : vector<2x32xf32>
    %c0_5 = arith.constant 0 : index
    %c0_6 = arith.constant 0 : index
    %6 = vector.load %arg3[%c0_5, %c0_6] : memref<2x32xf32, #tpu.memory_space<vmem>>, vector<2x32xf32>
    tpu.vector_store %arg3[%c0_5, %c0_6], %5 {strides = array<i32>} : memref<2x32xf32, #tpu.memory_space<vmem>>, vector<2x32xf32>,
    return
  }
}

</mosaic_0001>

<llo_original>
// kernel: fdlinear_forward.1
$region0: #{fdlinear_forward.1}
  #allocation0 [shape = 'u32[]', space=smem, size = 0x4, offset = 0x4, fixed_abs, tag = 'smem constant byte address 0x4 - core index']
  #allocation1 [shape = 'u32[144,128]{1,0:T(1,128)}', space=vmem, size = 0x12000, scoped, tag = 'internal scratch']
  %s0 = inlined_call_operand.vmem [shape: f32[2,64], index: 0, kind: input, shape index: {}]
  %s1 = inlined_call_operand.vmem [shape: f32[64,32], index: 1, kind: input, shape index: {}]
  %s2 = inlined_call_operand.vmem [shape: f32[1,32], index: 2, kind: input, shape index: {}]
  %s3 = inlined_call_operand.vmem [shape: f32[2,32], index: 3, kind: output, shape index: {}]
  %s4 = sld [smem:[#allocation0]]
  $region22: #{fdlinear_forward.1} parent=0
    _
  %s6 = ssub.s32 1, %s4
  %s7 = scalar_select 0, %s6, %s4
  // Predicated region
  $region2: #{fdlinear_forward.1} parent=0 // pred_check
    _
  $region3: #{fdlinear_forward.1} parent=0 // pred_check_branch
    %9 = sbr.rel (0) target = $region5
  $region4: #{fdlinear_forward.1} parent=0 // pred_region
    _
  $region5: #{fdlinear_forward.1} parent=0 // pred_fallthru
    _
  // Predicated region
  $region6: #{fdlinear_forward.1} parent=0 // pred_check
    _
  $region7: #{fdlinear_forward.1} parent=0 // pred_check_branch
    %11 = sbr.rel (0) target = $region9
  $region8: #{fdlinear_forward.1} parent=0 // pred_region
    _
  $region9: #{fdlinear_forward.1} parent=0 // pred_fallthru
    _
  // Predicated region
  $region10: #{fdlinear_forward.1} parent=0 // pred_check
    _
  $region11: #{fdlinear_forward.1} parent=0 // pred_check_branch
    %13 = sbr.rel (0) target = $region13
  $region12: #{fdlinear_forward.1} parent=0 // pred_region
    _
  $region13: #{fdlinear_forward.1} parent=0 // pred_fallthru
    _
  %v14 = vld [vmem:[%s0] sm:$0x3]
  %v15 = vld [vmem:[%s1] sm:$0xff]
  %v16 = vld [vmem:[%s1 + $0x8] sm:$0xff]
  %v17 = vld [vmem:[%s1 + $0x10] sm:$0xff]
  %v18 = vld [vmem:[%s1 + $0x18] sm:$0xff]
  %v19 = vld [vmem:[%s1 + $0x20] sm:$0xff]
  %v20 = vld [vmem:[%s1 + $0x28] sm:$0xff]
  %v21 = vld [vmem:[%s1 + $0x30] sm:$0xff]
  %v22 = vld [vmem:[%s1 + $0x38] sm:$0xff]
  %v23 = vld [vmem:[%s2] sm:$0x1]
  %v25 = vlaneseq
  %v26 = vshrl.u32 %v25, 7
  %v27 = vsub.s32 0, %v26
  %v28 = vrot.slane %v23, %v27
  %vm30 = vcmask 523264
  %v32 = vsel %vm30, %v14, 0
  %34 = vmatprep.subr.mxu0 0.0
  %35 = vmatpush1.msra.mxu0 %v15
  %36 = vmatprep.subr.mxu0 0.0
  %37 = vmatpush1.msra.mxu0 %v16
  %38 = vmatprep.subr.mxu0 0.0
  %39 = vmatpush1.msra.mxu0 %v17
  %40 = vmatprep.subr.mxu0 0.0
  %41 = vmatpush1.msra.mxu0 %v18
  %42 = vmatprep.subr.mxu0 0.0
  %43 = vmatpush1.msra.mxu0 %v19
  %44 = vmatprep.subr.mxu0 0.0
  %45 = vmatpush1.msra.mxu0 %v20
  %46 = vmatprep.subr.mxu0 0.0
  %47 = vmatpush1.msra.mxu0 %v21
  %48 = vmatprep.subr.mxu0 0.0
  %49 = vmatpush1.msra.mxu0 %v22
  %50 = vmatprep.subr.mxu0 0.0
  %51 = vmatpush1.msra.mxu0 0.0
  %52 = vmatprep.subr.mxu0 0.0
  %53 = vmatpush1.msra.mxu0 0.0
  %54 = vmatprep.subr.mxu0 0.0
  %55 = vmatpush1.msra.mxu0 0.0
  %56 = vmatprep.subr.mxu0 0.0
  %57 = vmatpush1.msra.mxu0 0.0
  %58 = vmatprep.subr.mxu0 0.0
  %59 = vmatpush1.msra.mxu0 0.0
  %60 = vmatprep.subr.mxu0 0.0
  %61 = vmatpush1.msra.mxu0 0.0
  %62 = vmatprep.subr.mxu0 0.0
  %63 = vmatpush1.msra.mxu0 0.0
  %64 = vmatprep.subr.mxu0 0.0
  %65 = vmatpush1.msra.mxu0 0.0
  %66 = vmatprep.subr.mxu0 0.0
  %67 = vmatpush1.msra.mxu0 0.0
  %68 = vmatprep.subr.mxu0 0.0
  %69 = vmatpush1.msra.mxu0 0.0
  %70 = vmatprep.subr.mxu0 0.0
  %71 = vmatpush1.msra.mxu0 0.0
  %72 = vmatprep.subr.mxu0 0.0
  %73 = vmatpush1.msra.mxu0 0.0
  %74 = vmatprep.subr.mxu0 0.0
  %75 = vmatpush1.msra.mxu0 0.0
  %76 = vmatprep.subr.mxu0 0.0
  %77 = vmatpush1.msra.mxu0 0.0
  %78 = vmatprep.subr.mxu0 0.0
  %79 = vmatpush1.msra.mxu0 0.0
  %80 = vmatprep.subr.mxu0 0.0
  %81 = vmatpush1.msra.mxu0 0.0
  %82 = vmatprep.subr.mxu0 0.0
  %83 = vmatpush1.msra.mxu0 0.0
  %84 = vmatprep.subr.mxu0 0.0
  %85 = vmatpush1.msra.mxu0 0.0
  %86 = vmatprep.subr.mxu0 0.0
  %87 = vmatpush1.msra.mxu0 0.0
  %88 = vmatprep.subr.mxu0 0.0
  %89 = vmatpush1.msra.mxu0 0.0
  %90 = vmatprep.subr.mxu0 0.0
  %91 = vmatpush1.msra.mxu0 0.0
  %92 = vmatprep.subr.mxu0 0.0
  %93 = vmatpush1.msra.mxu0 0.0
  %94 = vmatprep.subr.mxu0 0.0
  %95 = vmatpush1.msra.mxu0 0.0
  %96 = vmatprep.subr.mxu0 0.0
  %97 = vmatpush1.msra.mxu0 0.0
  %98 = vmatprep.mubr.f32.mxu0 0.0
  %99 = vmatmul.mubr.f32.gmra.mrb[0].mxu0 %v32
  %v100 = vpop.f32.mrb[0].mxu0
  %v101 = vadd.f32 %v28, %v100
  %v102 = vpop.f32.mrb[0].mxu0
  %103 = vdwg.mxu0
  %vm104 = vcmask 254976
  %105 = vst.msk [vmem:[%s3] sm:$0x3] %vm104, %v101
  // Predicated region
  $region14: #{fdlinear_forward.1} parent=0 // pred_check
    _
  $region15: #{fdlinear_forward.1} parent=0 // pred_check_branch
    %107 = sbr.rel (0) target = $region17
  $region16: #{fdlinear_forward.1} parent=0 // pred_region
    _
  $region17: #{fdlinear_forward.1} parent=0 // pred_fallthru
    _
  // Predicated region
  $region18: #{fdlinear_forward.1} parent=0 // pred_check
    _
  $region19: #{fdlinear_forward.1} parent=0 // pred_check_branch
    %109 = sbr.rel (0) target = $region21
  $region20: #{fdlinear_forward.1} parent=0 // pred_region
    _
  $region21: #{fdlinear_forward.1} parent=0 // pred_fallthru
    _

</llo_original>
